<compile_context>
chip_gen: v5e
topology: v5e:2x2
jax: 0.10.0
libtpu: 0.0.40
codegen_flags: <defaults>
</compile_context>

<pallas_src>
import functools

import jax
import jax.numpy as jnp
from jax.experimental import pallas as pl
from jax.experimental.pallas import tpu as pltpu


# ---------------------------------------------------------------------------
# Pallas kernel
# ---------------------------------------------------------------------------

def _pool_kernel(yi_ref, out_ref, *, weighted, mode):
    """One row tile per grid step.

    mode == "bins":   yi_ref is (T, r, bin_len); per-bin max over the lane axis.
    mode == "elem":   yi_ref is (T, L); bin_len == 1, so bin maxes == elements.
    mode == "rowmax": yi_ref is (T, L); r == 1, so the pool collapses to row max
                      for both the mean and the exp-weighted variants.
    """
    if mode == "rowmax":
        m = jnp.max(yi_ref[...], axis=-1, keepdims=True).astype(jnp.float32)   # (T, 1)
        out_ref[...] = m.astype(out_ref.dtype)
        return

    if mode == "elem":
        m = yi_ref[...].astype(jnp.float32)                                     # (T, L)
    else:  # "bins"
        # Max in the input dtype (exact), cast only the small (T, r) intermediate.
        m = jnp.max(yi_ref[...], axis=-1).astype(jnp.float32)                   # (T, r)

    if weighted:
        e = jnp.exp(m)                                                          # EUP
        out = jnp.sum(m * e, axis=-1, keepdims=True) / jnp.sum(e, axis=-1, keepdims=True)
    else:
        out = jnp.mean(m, axis=-1, keepdims=True)
    out_ref[...] = out.astype(out_ref.dtype)


# ---------------------------------------------------------------------------
# Wrapper: tiling / BlockSpecs
# ---------------------------------------------------------------------------

def _round_up(x, m):
    return ((x + m - 1) // m) * m


def _pick_tile_rows(rows, padded_row_bytes):
    """Rows per block.  ~4 MiB per buffer (x2 for double-buffering) keeps the
    pipeline well inside the scoped-VMEM defaults on v5e/v6e/v7x."""
    budget = 4 * 1024 * 1024
    t = max(8, budget // max(padded_row_bytes, 1))
    t = min(t, 512)
    if t >= rows:
        return rows                       # full extent is always a legal block
    return max(8, (t // 8) * 8)           # multiple of 8 -> (8,128) rule satisfied


def _pool_rows(x_rows, r, seq_len, *, weighted):
    """Pool every row of x_rows (rows, seq_len) -> (rows,) float32."""
    rows, L = x_rows.shape
    assert L == seq_len, "last axis must be the sequence axis"
    assert seq_len % r == 0, "r must divide seq_len (r is drawn from n_star)"
    bin_len = seq_len // r
    itemsize = jnp.dtype(x_rows.dtype).itemsize

    if r == 1:
        mode = "rowmax"
        x_in = x_rows                                          # (rows, L), lane-dense
        pad_row_bytes = _round_up(L, 128) * itemsize
        block_shape = lambda t: (t, L)
        index_map = lambda i: (i, 0)
    elif bin_len == 1:
        mode = "elem"
        x_in = x_rows                                          # (rows, L), lane-dense
        pad_row_bytes = _round_up(L, 128) * itemsize
        block_shape = lambda t: (t, L)
        index_map = lambda i: (i, 0)
    else:
        mode = "bins"
        x_in = x_rows.reshape(rows, r, bin_len)                # free contiguous reshape
        # VMEM tiles pad the last two dims up to (8, 128); budget with that footprint.
        pad_row_bytes = _round_up(r, 8) * _round_up(bin_len, 128) * itemsize
        block_shape = lambda t: (t, r, bin_len)
        index_map = lambda i: (i, 0, 0)

    tile_rows = _pick_tile_rows(rows, pad_row_bytes)
    grid = (pl.cdiv(rows, tile_rows),)

    n_exp = 0
    if weighted and r > 1:
        n_exp = rows * (L if bin_len == 1 else r)

    kernel = functools.partial(_pool_kernel, weighted=weighted, mode=mode)
    out = pl.pallas_call(
        kernel,
        out_shape=jax.ShapeDtypeStruct((rows, 1), jnp.float32),
        grid=grid,
        in_specs=[pl.BlockSpec(block_shape(tile_rows), index_map)],
        out_specs=pl.BlockSpec((tile_rows, 1), lambda i: (i, 0)),
        compiler_params=pltpu.CompilerParams(
            dimension_semantics=("parallel",),          # independent row tiles (2 TCs on v7x)
            vmem_limit_bytes=32 * 1024 * 1024),
        cost_estimate=pl.CostEstimate(
            flops=4 * rows * L,
            transcendentals=n_exp,
            bytes_accessed=rows * L * itemsize + rows * 4),
    )(x_in)
    return out[:, 0]


# ---------------------------------------------------------------------------
# Module mirrors
# ---------------------------------------------------------------------------

class HiPoolFamily:
    """JAX mirror of the PyTorch HiPoolFamily base module."""

    def __init__(self, seq_len, n_classes):
        self.seq_len = seq_len
        self.n_classes = n_classes
        self.n_star = [n for n in range(1, seq_len + 1) if seq_len % n == 0]
        self.training = True

    def init_layer(self, layer):
        # TODO(synk): helper for Linear/Conv subclasses; no such layers exist here.
        pass

    def pooling(self, yi, r):
        # yi: (B, C, seq_len) -> (B, C); max-pool bins then mean over bins.
        b, c, l = yi.shape
        y = _pool_rows(yi.reshape(b * c, l), r, self.seq_len, weighted=False)
        return y.reshape(b, c)

    def forward(self, *inputs):
        # Reference forward() is an empty stub that returns None; reproduced as-is.
        return None

    def train(self):
        self.training = True
        return self

    def eval(self):
        self.training = False
        return self


class HiPoolPlus(HiPoolFamily):
    """JAX mirror of the PyTorch HiPoolPlus module (Pallas pooling hot path)."""

    def __init__(self, seq_len, n_classes):
        super().__init__(seq_len, n_classes)
        self.w = jnp.ones((n_classes, len(self.n_star)), jnp.float32)
        self.tag = True

    def pooling(self, yi, r):
        # yi: (B, C, seq_len) -> (B, C); exp-weighted mean of per-bin maxes.
        b, c, l = yi.shape
        y = _pool_rows(yi.reshape(b * c, l), r, self.seq_len, weighted=True)
        return y.reshape(b, c)

    def forward(self, y_frame):
        # y_frame: (B, seq_len, n_classes)
        alphas = jax.nn.softmax(self.w, axis=-1)                     # (C, nR)
        B, L, C = y_frame.shape
        assert L == self.seq_len and C == self.n_classes
        # Put the pooled (sequence) axis last = lane axis; done once for all r.
        yt = jnp.transpose(y_frame, (0, 2, 1)).reshape(B * C, L)      # (B*C, L)

        if self.training:
            self.tag = False
            # One kernel call per candidate r, each pooling all (B*C) rows at once
            # (vectorizes the reference's per-class / per-r Python loops).
            pooled = jnp.stack(
                [_pool_rows(yt, r, self.seq_len, weighted=True).reshape(B, C)
                 for r in self.n_star],
                axis=-1)                                              # (B, C, nR)
            y_clip = jnp.sum(pooled * alphas[None, :, :], axis=-1)    # (B, C)
        else:
            if self.tag:
                print('Adaptive R with Seq {} : {}', self.seq_len, jnp.argmax(alphas, -1))
                self.tag = False
            cols = []
            y3 = yt.reshape(B, C, L)
            for k in range(C):
                r = self.n_star[int(jnp.argmax(alphas[k]))]           # adaptive R per class
                cols.append(_pool_rows(y3[:, k, :], r, self.seq_len, weighted=True))
            y_clip = jnp.stack(cols, axis=-1)                         # (B, C)
        return y_clip


# ---------------------------------------------------------------------------
# Pure-JAX references (correctness checks)
# ---------------------------------------------------------------------------

def _pool_rows_ref(x_rows, r, seq_len, *, weighted):
    rows, L = x_rows.shape
    bin_len = seq_len // r
    m = jnp.max(x_rows.reshape(rows, r, bin_len), axis=-1).astype(jnp.float32)
    if weighted:
        e = jnp.exp(m)
        return jnp.sum(m * e, axis=-1) / jnp.sum(e, axis=-1)
    return jnp.mean(m, axis=-1)


def _hipool_plus_forward_ref(w, y_frame, n_star, seq_len, training):
    alphas = jax.nn.softmax(w, axis=-1)
    B, L, C = y_frame.shape
    yt = jnp.transpose(y_frame, (0, 2, 1)).reshape(B * C, L)
    if training:
        pooled = jnp.stack(
            [_pool_rows_ref(yt, r, seq_len, weighted=True).reshape(B, C) for r in n_star],
            axis=-1)
        return jnp.sum(pooled * alphas[None, :, :], axis=-1)
    y3 = yt.reshape(B, C, L)
    cols = []
    for k in range(C):
        r = n_star[int(jnp.argmax(alphas[k]))]
        cols.append(_pool_rows_ref(y3[:, k, :], r, seq_len, weighted=True))
    return jnp.stack(cols, axis=-1)


# ---------------------------------------------------------------------------
# Demo / self-test
# ---------------------------------------------------------------------------

if __name__ == "__main__":
    batch, seq_len, n_classes = 2, 16, 3
    key = jax.random.PRNGKey(0)
    y_frame = jax.random.normal(key, (batch, seq_len, n_classes), dtype=jnp.float32)

    model = HiPoolPlus(seq_len, n_classes)
    ok = True

    # Training-mode forward: weighted pooling over every r in n_star, mixed by alphas.
    model.training = True
    y_train = model.forward(y_frame)
    jax.block_until_ready(y_train)
    y_train_ref = _hipool_plus_forward_ref(model.w, y_frame, model.n_star, seq_len, True)
    ok &= y_train.shape == (batch, n_classes)
    ok &= bool(jnp.allclose(y_train, y_train_ref, atol=1e-5, rtol=1e-5))

    # Eval-mode forward: adaptive r per class (tag already cleared by training pass).
    model.training = False
    y_eval = model.forward(y_frame)
    jax.block_until_ready(y_eval)
    y_eval_ref = _hipool_plus_forward_ref(model.w, y_frame, model.n_star, seq_len, False)
    ok &= y_eval.shape == (batch, n_classes)
    ok &= bool(jnp.allclose(y_eval, y_eval_ref, atol=1e-5, rtol=1e-5))

    # Base-family mean pooling path for every divisor r (forward() itself is a None stub).
    fam = HiPoolFamily(seq_len, n_classes)
    assert fam.forward(y_frame) is None
    yi = jnp.transpose(y_frame, (0, 2, 1))                      # (B, C, L)
    for r in fam.n_star:
        y = fam.pooling(yi, r)
        jax.block_until_ready(y)
        m = jnp.max(yi.reshape(batch, n_classes, r, seq_len // r), axis=-1)
        y_ref = jnp.mean(m, axis=-1)
        ok &= bool(jnp.allclose(y, y_ref, atol=1e-5, rtol=1e-5))

    if ok:
        print("KERNEL_OK")
    else:
        print("KERNEL_MISMATCH")
</pallas_src>

<mosaic_0001>
module attributes {stable_mosaic.version = 11 : i64} {
  func.func @_pool_kernel(%arg0: i32, %arg1: memref<6x16xf32, #tpu.memory_space<vmem>>, %arg2: memref<6x1xf32, #tpu.memory_space<vmem>>) attributes {dimension_semantics = [#tpu.dimension_semantics<parallel>], iteration_bounds = array<i64: 1>, scalar_prefetch = 0 : i64, scratch_operands = 0 : i64, tpu.core_type = #tpu.core_type<tc>, window_params = [{transform_indices = @transform_0, window_bounds = array<i64: 6, 16>}, {transform_indices = @transform_1, window_bounds = array<i64: 6, 1>}]} {
    %c0 = arith.constant 0 : index
    %c0_0 = arith.constant 0 : index
    %0 = vector.load %arg1[%c0, %c0_0] : memref<6x16xf32, #tpu.memory_space<vmem>>, vector<6x16xf32>
    %cst = arith.constant dense<0xFF800000> : vector<6xf32>
    %1 = vector.multi_reduction <maximumf>, %0, %cst [1] : vector<6x16xf32> to vector<6xf32>
    %2 = vector.shape_cast %1 : vector<6xf32> to vector<6x1xf32>
    %c0_1 = arith.constant 0 : index
    %c0_2 = arith.constant 0 : index
    %3 = vector.load %arg2[%c0_1, %c0_2] : memref<6x1xf32, #tpu.memory_space<vmem>>, vector<6x1xf32>
    tpu.vector_store %arg2[%c0_1, %c0_2], %2 {strides = array<i32>} : memref<6x1xf32, #tpu.memory_space<vmem>>, vector<6x1xf32>,
    return
  }
  func.func @transform_0(%arg0: i32) -> (i32, i32) {
    %c0_i32 = arith.constant 0 : i32
    %c0_i32_0 = arith.constant 0 : i32
    return %arg0, %c0_i32 : i32, i32
  }
  func.func @transform_1(%arg0: i32) -> (i32, i32) {
    %c0_i32 = arith.constant 0 : i32
    %c0_i32_0 = arith.constant 0 : i32
    return %arg0, %c0_i32 : i32, i32
  }
}

</mosaic_0001>

<llo_original>
// kernel: tpu_custom_call.1
$region0: #{tpu_custom_call.1}
  #allocation0 [shape = 'u32[]', space=smem, size = 0x4, offset = 0x4, fixed_abs, tag = 'smem constant byte address 0x4 - core index']
  #allocation1 [shape = 'u32[72,128]{1,0:T(1,128)}', space=vmem, size = 0x9000, scoped, tag = 'internal scratch']
  %s0 = inlined_call_operand.hbm [shape: f32[6,16], index: 0, kind: input, shape index: {}]
  %s1 = inlined_call_operand.vmem [shape: f32[6,1], index: 1, kind: output, shape index: {}]
  %s2 = sld [smem:[#allocation0]]
  $region18: #{tpu_custom_call.1} parent=0
    _
  %s4 = ssub.s32 1, %s2
  %s5 = scalar_select 0, %s4, %s2
  $region1: #{tpu_custom_call.1} parent=0
    #allocation2 [shape = 'u8[4096]{0}', space=vmem, size = 0x1000, scoped, tag = 'input window, operand 0, single buffered']
    #allocation3 [shape = 's32[1]{0}', space=sflag, size = 0x4, scoped, tag = 'scoped memory for tpu_custom_call.1']
    %6 = vsyncpa [#allocation3], 0
    // Predicated region
    $region2: #{tpu_custom_call.1} parent=1 // pred_check
      _
    $region3: #{tpu_custom_call.1} parent=1 // pred_check_branch
      %8 = sbr.rel (0) target = $region5
    $region4: #{tpu_custom_call.1} parent=1 // pred_region
      %10 = vsyncadd [#allocation3], 0
      %s12 = sshll.u32 %s0, 4
      %s13 = int_to_ptr.hbm [resolvable:$true] %s12
      %s14 = sshll.u32 [#allocation2], 4
      %s15 = int_to_ptr.vmem [resolvable:$true] %s14
      %17 = dma.hbm_to_vmem [thread:$0]  %s13, 128, %s15, [#allocation3]
    $region5: #{tpu_custom_call.1} parent=1 // pred_fallthru
      _
    // Predicated region
    $region6: #{tpu_custom_call.1} parent=1 // pred_check
      _
    $region7: #{tpu_custom_call.1} parent=1 // pred_check_branch
      %19 = sbr.rel (0) target = $region9
    $region8: #{tpu_custom_call.1} parent=1 // pred_region
      %21 = dma.done [#allocation3], 128
    $region9: #{tpu_custom_call.1} parent=1 // pred_fallthru
      _
    %v22 = vld [vmem:[#allocation2] sm:$0x3f]
    %vm23 = vcmask 128000
    %v24 = vsel %vm23, %v22, -inf
    %25 = vmax.xlane.f32.xlu0 %v24
    %v26 = vpop.xlane.xlu0 %25
    %vm27 = vcmask 5120
    %28 = vst.msk [vmem:[%s1] sm:$0x3f] %vm27, %v26
    // Predicated region
    $region10: #{tpu_custom_call.1} parent=1 // pred_check
      _
    $region11: #{tpu_custom_call.1} parent=1 // pred_check_branch
      %30 = sbr.rel (0) target = $region13
    $region12: #{tpu_custom_call.1} parent=1 // pred_region
      _
    $region13: #{tpu_custom_call.1} parent=1 // pred_fallthru
      _
    // Predicated region
    $region14: #{tpu_custom_call.1} parent=1 // pred_check
      _
    $region15: #{tpu_custom_call.1} parent=1 // pred_check_branch
      %32 = sbr.rel (0) target = $region17
    $region16: #{tpu_custom_call.1} parent=1 // pred_region
      _
    $region17: #{tpu_custom_call.1} parent=1 // pred_fallthru
      _
    %33 = vsyncpa [#allocation3], 1

</llo_original>
